<compile_context>
chip_gen: v5e
topology: v5e:2x2
jax: 0.10.0
libtpu: 0.0.40
codegen_flags: <defaults>
</compile_context>

<pallas_src>
import jax
import jax.numpy as jnp
from jax.experimental import pallas as pl
from jax.experimental.pallas import tpu as pltpu

LEAKY_SLOPE = 0.01   # nn.LeakyReLU() default negative_slope
ROW_TILE = 256       # row tile / node-dim padding granularity
LANE = 128           # lane width / feature-dim padding granularity


def _leaky_relu(v):
    return jnp.where(v >= 0, v, LEAKY_SLOPE * v)


def _round_up(x, m):
    return ((x + m - 1) // m) * m


def _pad2d(a, rows, cols):
    r, c = a.shape
    if r == rows and c == cols:
        return a
    return jnp.pad(a, ((0, rows - r), (0, cols - c)))


def _pad1d(a, n):
    return a if a.shape[0] == n else jnp.pad(a, (0, n - a.shape[0]))


# ----------------------------------------------------------------------------
# Kernels
# ----------------------------------------------------------------------------
def _epilogue(y, b_ref, add_ref, activate, act_after_add, o_ref):
    """y is an f32 tile; applies [+bias] [act] [+add] [act] and stores."""
    if b_ref is not None:
        y = y + b_ref[...].astype(jnp.float32)
    if activate and not act_after_add:
        y = _leaky_relu(y)
    if add_ref is not None:
        y = y + add_ref[...].astype(jnp.float32)
    if activate and act_after_add:
        y = _leaky_relu(y)
    o_ref[...] = y.astype(o_ref.dtype)


def _make_linear_kernel(*, activate, has_bias, has_add, act_after_add,
                        single_k):
    """out = f(x @ W [+ b] [+ add]).

    single_k=True : one K step, no accumulator scratch, epilogue inline.
    single_k=False: K-tiled, accumulates f32 in VMEM scratch, epilogue on the
                    last K grid step.
    """

    def kernel(*refs):
        idx = 0
        x_ref = refs[idx]; idx += 1
        w_ref = refs[idx]; idx += 1
        b_ref = refs[idx] if has_bias else None
        idx += int(has_bias)
        add_ref = refs[idx] if has_add else None
        idx += int(has_add)
        o_ref = refs[idx]

        if single_k:
            y = jnp.dot(x_ref[...], w_ref[...],
                        preferred_element_type=jnp.float32)
            _epilogue(y, b_ref, add_ref, activate, act_after_add, o_ref)
        else:
            acc_ref = refs[idx + 1]
            k = pl.program_id(1)

            @pl.when(k == 0)
            def _():
                acc_ref[...] = jnp.zeros_like(acc_ref)

            acc_ref[...] += jnp.dot(x_ref[...], w_ref[...],
                                    preferred_element_type=jnp.float32)

            @pl.when(k == pl.num_programs(1) - 1)
            def _():
                _epilogue(acc_ref[...], b_ref, add_ref, activate,
                          act_after_add, o_ref)

    return kernel


def _dual_linear_kernel(h_ref, wa_ref, x_ref, wb_ref, b_ref, o_ref):
    """out = LeakyReLU(h @ Wa + x @ Wb + b)  (== LeakyReLU(cat(h, x) @ W + b))"""
    y = jnp.dot(h_ref[...], wa_ref[...], preferred_element_type=jnp.float32)
    y = y + jnp.dot(x_ref[...], wb_ref[...], preferred_element_type=jnp.float32)
    y = y + b_ref[...].astype(jnp.float32)
    o_ref[...] = _leaky_relu(y).astype(o_ref.dtype)


def _normalize_kernel(x_ref, o_ref):
    # F.normalize(x, dim=-1): x / max(||x||_2, eps), eps = 1e-12
    x = x_ref[...].astype(jnp.float32)
    norm = jnp.sqrt(jnp.sum(x * x, axis=-1, keepdims=True))
    o_ref[...] = (x / jnp.maximum(norm, 1e-12)).astype(o_ref.dtype)


# ----------------------------------------------------------------------------
# Wrappers
# ----------------------------------------------------------------------------
def _row_tiling(M, tm):
    if M <= tm:
        return M, M            # tm_eff, M_pad  (block == full dim, always legal)
    return tm, _round_up(M, tm)


def linear_pallas(x, w, b=None, *, activate, add=None, act_after_add=False,
                  compute_dtype=None, out_dtype=None, tm=ROW_TILE, tk=512):
    """f(x @ w [+ b] [+ add]) with Pallas; row-tiled (tm) and K-tiled (tk).

    compute_dtype: optional cast of the matmul operands (e.g. bf16). The
    accumulator, bias, residual add and activation stay in f32.
    """
    M, K = x.shape
    Kw, Nout = w.shape
    assert K == Kw
    if out_dtype is None:
        out_dtype = x.dtype

    if compute_dtype is not None:
        x = x.astype(compute_dtype)
        w = w.astype(compute_dtype)

    tm_eff, M_pad = _row_tiling(M, tm)

    if K <= tk:
        tk_eff, K_pad = K, K
        single_k = True
    else:
        K_pad = _round_up(K, LANE)
        # 128-aligned divisors of K_pad so tiling never forces extra padding;
        # keep the (double-buffered) RHS tile under ~8 MiB for huge Nout.
        itemsize = jnp.dtype(x.dtype).itemsize
        cands = [d for d in range(LANE, tk + 1, LANE) if K_pad % d == 0]
        ok = [d for d in cands if d * Nout * itemsize <= (8 << 20)]
        tk_eff = max(ok) if ok else min(cands)
        single_k = False

    x_p = _pad2d(x, M_pad, K_pad)
    w_p = _pad2d(w, K_pad, Nout)

    if single_k:
        grid = (M_pad // tm_eff,)
        in_specs = [
            pl.BlockSpec((tm_eff, K_pad), lambda i: (i, 0)),
            pl.BlockSpec((K_pad, Nout), lambda i: (0, 0)),
        ]
        bias_spec = pl.BlockSpec((1, Nout), lambda i: (0, 0))
        add_spec = pl.BlockSpec((tm_eff, Nout), lambda i: (i, 0))
        out_spec = pl.BlockSpec((tm_eff, Nout), lambda i: (i, 0))
        scratch = []
        dim_sem = ("parallel",)
    else:
        grid = (M_pad // tm_eff, K_pad // tk_eff)
        in_specs = [
            pl.BlockSpec((tm_eff, tk_eff), lambda i, k: (i, k)),
            pl.BlockSpec((tk_eff, Nout), lambda i, k: (k, 0)),
        ]
        bias_spec = pl.BlockSpec((1, Nout), lambda i, k: (0, 0))
        add_spec = pl.BlockSpec((tm_eff, Nout), lambda i, k: (i, 0))
        out_spec = pl.BlockSpec((tm_eff, Nout), lambda i, k: (i, 0))
        scratch = [pltpu.VMEM((tm_eff, Nout), jnp.float32)]
        dim_sem = ("parallel", "arbitrary")

    args = [x_p, w_p]
    if b is not None:
        args.append(b.reshape(1, Nout).astype(jnp.float32))
        in_specs.append(bias_spec)
    if add is not None:
        args.append(_pad2d(add, M_pad, Nout))
        in_specs.append(add_spec)

    kernel = _make_linear_kernel(activate=activate, has_bias=b is not None,
                                 has_add=add is not None,
                                 act_after_add=act_after_add,
                                 single_k=single_k)

    bytes_accessed = int(
        x_p.size * x_p.dtype.itemsize + w_p.size * w_p.dtype.itemsize +
        M_pad * Nout * jnp.dtype(out_dtype).itemsize +
        (add.size * add.dtype.itemsize if add is not None else 0))

    out = pl.pallas_call(
        kernel,
        out_shape=jax.ShapeDtypeStruct((M_pad, Nout), out_dtype),
        grid=grid,
        in_specs=in_specs,
        out_specs=out_spec,
        scratch_shapes=scratch,
        compiler_params=pltpu.CompilerParams(dimension_semantics=dim_sem),
        cost_estimate=pl.CostEstimate(
            flops=2 * M_pad * K_pad * Nout,
            transcendentals=0,
            bytes_accessed=bytes_accessed),
    )(*args)
    return out[:M] if M_pad != M else out


def dual_linear_pallas(h, wa, x, wb, b, *, compute_dtype=None, out_dtype=None,
                       tm=ROW_TILE):
    """LeakyReLU(h @ wa + x @ wb + b) — fused replacement for
    LeakyReLU(cat(h, x) @ w + b) with w = [wa; wb]."""
    M, Ka = h.shape
    M2, Kb = x.shape
    Nout = wa.shape[1]
    assert M == M2 and wa.shape[0] == Ka and wb.shape == (Kb, Nout)
    if out_dtype is None:
        out_dtype = x.dtype

    if compute_dtype is not None:
        h = h.astype(compute_dtype)
        wa = wa.astype(compute_dtype)
        x = x.astype(compute_dtype)
        wb = wb.astype(compute_dtype)

    tm_eff, M_pad = _row_tiling(M, tm)
    h_p = _pad2d(h, M_pad, Ka)
    x_p = _pad2d(x, M_pad, Kb)

    bytes_accessed = int(h_p.size * h_p.dtype.itemsize +
                         x_p.size * x_p.dtype.itemsize +
                         wa.size * wa.dtype.itemsize +
                         wb.size * wb.dtype.itemsize +
                         M_pad * Nout * jnp.dtype(out_dtype).itemsize)

    out = pl.pallas_call(
        _dual_linear_kernel,
        out_shape=jax.ShapeDtypeStruct((M_pad, Nout), out_dtype),
        grid=(M_pad // tm_eff,),
        in_specs=[
            pl.BlockSpec((tm_eff, Ka), lambda i: (i, 0)),
            pl.BlockSpec((Ka, Nout), lambda i: (0, 0)),
            pl.BlockSpec((tm_eff, Kb), lambda i: (i, 0)),
            pl.BlockSpec((Kb, Nout), lambda i: (0, 0)),
            pl.BlockSpec((1, Nout), lambda i: (0, 0)),
        ],
        out_specs=pl.BlockSpec((tm_eff, Nout), lambda i: (i, 0)),
        compiler_params=pltpu.CompilerParams(
            dimension_semantics=("parallel",)),
        cost_estimate=pl.CostEstimate(
            flops=2 * M_pad * (Ka + Kb) * Nout,
            transcendentals=0,
            bytes_accessed=bytes_accessed),
    )(h_p, wa, x_p, wb, b.reshape(1, Nout).astype(jnp.float32))
    return out[:M] if M_pad != M else out


def normalize_pallas(x, *, tm=ROW_TILE):
    M, D = x.shape
    tm_eff, M_pad = _row_tiling(M, tm)
    x_p = _pad2d(x, M_pad, D)
    out = pl.pallas_call(
        _normalize_kernel,
        out_shape=jax.ShapeDtypeStruct((M_pad, D), x.dtype),
        grid=(M_pad // tm_eff,),
        in_specs=[pl.BlockSpec((tm_eff, D), lambda i: (i, 0))],
        out_specs=pl.BlockSpec((tm_eff, D), lambda i: (i, 0)),
        compiler_params=pltpu.CompilerParams(
            dimension_semantics=("parallel",)),
    )(x_p)
    return out[:M] if M_pad != M else out


# ----------------------------------------------------------------------------
# GraphConvNet forward (Pallas)
# ----------------------------------------------------------------------------
def graph_conv_net_forward(params, mItem, idEmbds, A, *, fusion_mode="cat",
                           use_bf16=True):
    """use_bf16=True casts matmul operands (A, weights, intermediates) to bf16
    for the MXU / HBM-traffic win; accumulation, bias, residual and activation
    stay in f32.

    All node/feature dims are zero-padded ONCE up front (rows -> multiple of
    256, features -> multiple of 128) so every kernel sees lane-dense,
    tile-aligned operands with no per-call padding/slicing; zero padding is
    value-preserving for every op in this forward, and the real result is
    sliced out at the end.
    """
    cdt = jnp.bfloat16 if use_bf16 else None
    acc_dtype = idEmbds.dtype                 # dtype carried across layers
    inter_dtype = jnp.bfloat16 if use_bf16 else acc_dtype

    F_dim = params["mUser"].shape[1]
    E_dim = idEmbds.shape[1]
    F_pad = _round_up(F_dim, LANE)
    E_pad = _round_up(E_dim, LANE)

    # x = cat(mUser, mItem); x = normalize(x, dim=-1)   (concat is glue)
    x = jnp.concatenate([params["mUser"], mItem], axis=0)
    N = x.shape[0]
    N_pad = N if N <= ROW_TILE else _round_up(N, ROW_TILE)

    x = normalize_pallas(_pad2d(x, N_pad, F_pad))     # zero pads stay zero
    A_p = _pad2d(A, N_pad, N_pad)
    idE = _pad2d(idEmbds, N_pad, E_pad)

    for li, ((w1, b1), (w2, b2), (w3, b3)) in enumerate(
            zip(params["aggr"], params["m2id"], params["fusion"])):
        h_real = w1.shape[1]                          # real width of h
        in_pad = F_pad if li == 0 else E_pad          # padded width of x
        h_pad = F_pad if li == 0 else E_pad           # padded width of h

        w1_p = _pad2d(w1, in_pad, h_pad)
        b1_p = _pad1d(b1, h_pad)
        w2_p = _pad2d(w2, in_pad, E_pad)
        b2_p = _pad1d(b2, E_pad)

        # y = linear1(x)   (written narrow so A @ y reads half the bytes in bf16)
        y = linear_pallas(x, w1_p, b1_p, activate=False,
                          compute_dtype=cdt, out_dtype=inter_dtype)
        # h = LeakyReLU(A @ y)   (no bias -> no bias DMA / epilogue add; K-tiled)
        h = linear_pallas(A_p, y, None, activate=True,
                          compute_dtype=cdt, out_dtype=inter_dtype)
        # x_hat = LeakyReLU(linear2(x)) + idEmbds   (residual kept f32)
        x_hat = linear_pallas(x, w2_p, b2_p, activate=True, add=idE,
                              compute_dtype=cdt, out_dtype=acc_dtype)

        if fusion_mode == "cat":
            # act(cat(h, x_hat) @ w3 + b3) == act(h @ w3a + x_hat @ w3b + b3)
            w3a = _pad2d(w3[:h_real], h_pad, E_pad)
            w3b = _pad2d(w3[h_real:], E_pad, E_pad)
            b3_p = _pad1d(b3, E_pad)
            x = dual_linear_pallas(h, w3a, x_hat, w3b, b3_p,
                                   compute_dtype=cdt, out_dtype=acc_dtype)
        else:
            # x = LeakyReLU(linear3(h) + x_hat)
            w3_p = _pad2d(w3, h_pad, E_pad)
            b3_p = _pad1d(b3, E_pad)
            x = linear_pallas(h, w3_p, b3_p, activate=True, add=x_hat,
                              act_after_add=True,
                              compute_dtype=cdt, out_dtype=acc_dtype)

    if N_pad != N or E_pad != E_dim:
        x = x[:N, :E_dim]
    return x


# ----------------------------------------------------------------------------
# Pure-JAX reference (for correctness check)
# ----------------------------------------------------------------------------
def reference_forward(params, mItem, idEmbds, A, *, fusion_mode="cat"):
    x = jnp.concatenate([params["mUser"], mItem], axis=0)
    n = jnp.sqrt(jnp.sum(x * x, axis=-1, keepdims=True))
    x = x / jnp.maximum(n, 1e-12)
    for l in range(len(params["aggr"])):
        w1, b1 = params["aggr"][l]
        w2, b2 = params["m2id"][l]
        w3, b3 = params["fusion"][l]
        h = _leaky_relu(A @ (x @ w1 + b1))
        x_hat = _leaky_relu(x @ w2 + b2) + idEmbds
        if fusion_mode == "cat":
            x = _leaky_relu(jnp.concatenate([h, x_hat], axis=-1) @ w3 + b3)
        else:
            x = _leaky_relu((h @ w3 + b3) + x_hat)
    return x


# ----------------------------------------------------------------------------
# Deterministic parameter construction
# ----------------------------------------------------------------------------
def init_params(key, num_users, feature_dim, embedding_dim, num_layers=3,
                fusion_mode="cat", dtype=jnp.float32):
    keys = iter(jax.random.split(key, 64))

    # mUser: xavier_normal_
    std = (2.0 / (num_users + feature_dim)) ** 0.5
    mUser = std * jax.random.normal(next(keys), (num_users, feature_dim), dtype)

    def linear(k, fan_in, fan_out):
        kw, kb = jax.random.split(k)
        # deterministic stand-in for PyTorch's default Linear init
        bound = 1.0 / (fan_in ** 0.5)
        w = jax.random.uniform(kw, (fan_in, fan_out), dtype, -bound, bound)
        b = jax.random.uniform(kb, (fan_out,), dtype, -bound, bound)
        return w, b

    aggr_dims = [(feature_dim, feature_dim),
                 (embedding_dim, embedding_dim),
                 (embedding_dim, embedding_dim)]
    m2id_dims = [(feature_dim, embedding_dim),
                 (embedding_dim, embedding_dim),
                 (embedding_dim, embedding_dim)]
    if fusion_mode == "cat":
        fusion_dims = [(feature_dim + embedding_dim, embedding_dim),
                       (embedding_dim + embedding_dim, embedding_dim),
                       (embedding_dim + embedding_dim, embedding_dim)]
    else:
        fusion_dims = [(feature_dim, embedding_dim),
                       (embedding_dim, embedding_dim),
                       (embedding_dim, embedding_dim)]

    return {
        "mUser": mUser,
        "aggr": [linear(next(keys), *d) for d in aggr_dims[:num_layers]],
        "m2id": [linear(next(keys), *d) for d in m2id_dims[:num_layers]],
        "fusion": [linear(next(keys), *d) for d in fusion_dims[:num_layers]],
    }


# ----------------------------------------------------------------------------
if __name__ == "__main__":
    num_users, num_items = 16, 16
    feature_dim, embedding_dim = 32, 32
    num_layers = 3
    N = num_users + num_items

    key = jax.random.PRNGKey(0)
    kp, k_item, k_id, k_a, kp2 = jax.random.split(key, 5)

    mItem = jax.random.normal(k_item, (num_items, feature_dim), jnp.float32)
    idEmbds = jax.random.normal(k_id, (N, embedding_dim), jnp.float32)
    # simple adjacency-like matrix
    A = jax.random.uniform(k_a, (N, N), jnp.float32) / N

    # --- fusion_mode='cat' ---
    params = init_params(kp, num_users, feature_dim, embedding_dim,
                         num_layers, "cat")
    ref = reference_forward(params, mItem, idEmbds, A, fusion_mode="cat")

    out_f32 = graph_conv_net_forward(params, mItem, idEmbds, A,
                                     fusion_mode="cat", use_bf16=False)
    out_f32 = jax.block_until_ready(out_f32)
    assert out_f32.shape == (N, embedding_dim)
    assert jnp.allclose(out_f32, ref, atol=1e-4, rtol=1e-4), \
        "f32 'cat' mismatch vs reference"

    out_bf16 = graph_conv_net_forward(params, mItem, idEmbds, A,
                                      fusion_mode="cat", use_bf16=True)
    out_bf16 = jax.block_until_ready(out_bf16)
    assert jnp.allclose(out_bf16, ref, atol=1e-1, rtol=1e-1), \
        "bf16 'cat' mismatch vs reference (beyond bf16 tolerance)"

    # --- non-'cat' (sum) fusion mode ---
    params2 = init_params(kp2, num_users, feature_dim, embedding_dim,
                          num_layers, "id")
    ref2 = reference_forward(params2, mItem, idEmbds, A, fusion_mode="id")
    out2 = graph_conv_net_forward(params2, mItem, idEmbds, A,
                                  fusion_mode="id", use_bf16=False)
    out2 = jax.block_until_ready(out2)
    assert jnp.allclose(out2, ref2, atol=1e-4, rtol=1e-4), \
        "f32 'id' mismatch vs reference"

    print("KERNEL_OK")
</pallas_src>

<mosaic_0001>
module attributes {stable_mosaic.version = 11 : i64} {
  func.func @_normalize_kernel(%arg0: i32, %arg1: memref<32x128xf32, #tpu.memory_space<vmem>>, %arg2: memref<32x128xf32, #tpu.memory_space<vmem>>) attributes {dimension_semantics = [#tpu.dimension_semantics<parallel>], iteration_bounds = array<i64: 1>, scalar_prefetch = 0 : i64, scratch_operands = 0 : i64, tpu.core_type = #tpu.core_type<tc>, window_params = [{transform_indices = @transform_0, window_bounds = array<i64: 32, 128>}, {transform_indices = @transform_1, window_bounds = array<i64: 32, 128>}]} {
    %c0 = arith.constant 0 : index
    %c0_0 = arith.constant 0 : index
    %0 = vector.load %arg1[%c0, %c0_0] : memref<32x128xf32, #tpu.memory_space<vmem>>, vector<32x128xf32>
    %1 = arith.mulf %0, %0 : vector<32x128xf32>
    %cst = arith.constant dense<0.000000e+00> : vector<32xf32>
    %2 = vector.multi_reduction <add>, %1, %cst [1] : vector<32x128xf32> to vector<32xf32>
    %3 = vector.shape_cast %2 : vector<32xf32> to vector<32x1xf32>
    %4 = math.sqrt %3 : vector<32x1xf32>
    %cst_1 = arith.constant 9.99999996E-13 : f32
    %5 = vector.broadcast %cst_1 : f32 to vector<32x1xf32>
    %6 = arith.maximumf %4, %5 : vector<32x1xf32>
    %7 = vector.broadcast %6 : vector<32x1xf32> to vector<32x128xf32>
    %8 = arith.divf %0, %7 : vector<32x128xf32>
    %c0_2 = arith.constant 0 : index
    %c0_3 = arith.constant 0 : index
    %9 = vector.load %arg2[%c0_2, %c0_3] : memref<32x128xf32, #tpu.memory_space<vmem>>, vector<32x128xf32>
    tpu.vector_store %arg2[%c0_2, %c0_3], %8 {strides = array<i32>} : memref<32x128xf32, #tpu.memory_space<vmem>>, vector<32x128xf32>,
    return
  }
  func.func @transform_0(%arg0: i32) -> (i32, i32) {
    %c0_i32 = arith.constant 0 : i32
    %c0_i32_0 = arith.constant 0 : i32
    return %arg0, %c0_i32 : i32, i32
  }
  func.func @transform_1(%arg0: i32) -> (i32, i32) {
    %c0_i32 = arith.constant 0 : i32
    %c0_i32_0 = arith.constant 0 : i32
    return %arg0, %c0_i32 : i32, i32
  }
}

</mosaic_0001>

<llo_original>
// kernel: tpu_custom_call.1
$region0: #{tpu_custom_call.1}
  #allocation0 [shape = 'u32[]', space=smem, size = 0x4, offset = 0x4, fixed_abs, tag = 'smem constant byte address 0x4 - core index']
  #allocation1 [shape = 'u32[72,128]{1,0:T(1,128)}', space=vmem, size = 0x9000, scoped, tag = 'internal scratch']
  %s0 = inlined_call_operand.hbm [shape: f32[32,128], index: 0, kind: input, shape index: {}]
  %s1 = inlined_call_operand.hbm [shape: f32[32,128], index: 1, kind: output, shape index: {}]
  %s2 = sld [smem:[#allocation0]]
  $region18: #{tpu_custom_call.1} parent=0
    _
  %s4 = ssub.s32 1, %s2
  %s5 = scalar_select 0, %s4, %s2
  $region1: #{tpu_custom_call.1} parent=0
    #allocation2 [shape = 'u8[16384]{0}', space=vmem, size = 0x4000, scoped, tag = 'input window, operand 0, single buffered']
    #allocation3 [shape = 's32[1]{0}', space=sflag, size = 0x4, scoped, tag = 'scoped memory for tpu_custom_call.1']
    #allocation4 [shape = 's32[1]{0}', space=sflag, size = 0x4, scoped, tag = 'scoped memory for tpu_custom_call.1']
    #allocation5 [shape = 'u8[16384]{0}', space=vmem, size = 0x4000, scoped, tag = 'output window, operand 0, single buffered']
    %6 = vsyncpa [#allocation3], 0
    %7 = vsyncpa [#allocation4], 0
    // Predicated region
    $region2: #{tpu_custom_call.1} parent=1 // pred_check
      _
    $region3: #{tpu_custom_call.1} parent=1 // pred_check_branch
      %9 = sbr.rel (0) target = $region5
    $region4: #{tpu_custom_call.1} parent=1 // pred_region
      %11 = vsyncadd [#allocation3], 0
      %s12 = sshll.u32 %s0, 4
      %s13 = int_to_ptr.hbm [resolvable:$true] %s12
      %s14 = sshll.u32 [#allocation2], 4
      %s15 = int_to_ptr.vmem [resolvable:$true] %s14
      %20 = dma.hbm_to_vmem [thread:$0]  %s13, 512, %s15, [#allocation3], 128, 128, 8
    $region5: #{tpu_custom_call.1} parent=1 // pred_fallthru
      _
    // Predicated region
    $region6: #{tpu_custom_call.1} parent=1 // pred_check
      _
    $region7: #{tpu_custom_call.1} parent=1 // pred_check_branch
      %22 = sbr.rel (0) target = $region9
    $region8: #{tpu_custom_call.1} parent=1 // pred_region
      %24 = dma.done [#allocation3], 512
    $region9: #{tpu_custom_call.1} parent=1 // pred_fallthru
      _
    %v25 = vld [vmem:[#allocation2] sm:$0xff]
    %v26 = vld [vmem:[#allocation2 + $0x8] sm:$0xff]
    %v27 = vld [vmem:[#allocation2 + $0x10] sm:$0xff]
    %v28 = vld [vmem:[#allocation2 + $0x18] sm:$0xff]
    %v29 = vmul.f32 %v25, %v25
    %v30 = vmul.f32 %v26, %v26
    %v31 = vmul.f32 %v27, %v27
    %v32 = vmul.f32 %v28, %v28
    %33 = vadd.xlane.f32.xlu0 %v29
    %v34 = vpop.xlane.xlu0 %33
    %35 = vadd.xlane.f32.xlu0 %v30
    %v36 = vpop.xlane.xlu0 %35
    %37 = vadd.xlane.f32.xlu0 %v31
    %v38 = vpop.xlane.xlu0 %37
    %39 = vadd.xlane.f32.xlu0 %v32
    %v40 = vpop.xlane.xlu0 %39
    %v41 = vrsqrt.pop %v34
    %v42 = vmul.f32 %v41, %v34
    %v43 = vmul.f32 %v42, %v41
    %v44 = vmul.f32 0.5, %v43
    %v45 = vsub.f32 1.5, %v44
    %v46 = vmul.f32 %v41, %v45
    %v47 = vmul.f32 %v34, %v46
    %vm48 = vcmp.eq.f32.partialorder %v34, inf
    %v49 = vsel %vm48, %v34, %v47
    %vm50 = vcmp.eq.f32.partialorder %v34, 0.0
    %v51 = vand.u32 %v34, 2147483648
    %v52 = vsel %vm50, %v51, %v49
    %v53 = vrsqrt.pop %v36
    %v54 = vmul.f32 %v53, %v36
    %v55 = vmul.f32 %v54, %v53
    %v56 = vmul.f32 0.5, %v55
    %v57 = vsub.f32 1.5, %v56
    %v58 = vmul.f32 %v53, %v57
    %v59 = vmul.f32 %v36, %v58
    %vm60 = vcmp.eq.f32.partialorder %v36, inf
    %v61 = vsel %vm60, %v36, %v59
    %vm62 = vcmp.eq.f32.partialorder %v36, 0.0
    %v63 = vand.u32 %v36, 2147483648
    %v64 = vsel %vm62, %v63, %v61
    %v65 = vrsqrt.pop %v38
    %v66 = vmul.f32 %v65, %v38
    %v67 = vmul.f32 %v66, %v65
    %v68 = vmul.f32 0.5, %v67
    %v69 = vsub.f32 1.5, %v68
    %v70 = vmul.f32 %v65, %v69
    %v71 = vmul.f32 %v38, %v70
    %vm72 = vcmp.eq.f32.partialorder %v38, inf
    %v73 = vsel %vm72, %v38, %v71
    %vm74 = vcmp.eq.f32.partialorder %v38, 0.0
    %v75 = vand.u32 %v38, 2147483648
    %v76 = vsel %vm74, %v75, %v73
    %v77 = vrsqrt.pop %v40
    %v78 = vmul.f32 %v77, %v40
    %v79 = vmul.f32 %v78, %v77
    %v80 = vmul.f32 0.5, %v79
    %v81 = vsub.f32 1.5, %v80
    %v82 = vmul.f32 %v77, %v81
    %v83 = vmul.f32 %v40, %v82
    %vm84 = vcmp.eq.f32.partialorder %v40, inf
    %v85 = vsel %vm84, %v40, %v83
    %vm86 = vcmp.eq.f32.partialorder %v40, 0.0
    %v87 = vand.u32 %v40, 2147483648
    %v88 = vsel %vm86, %v87, %v85
    %v89 = vmax.f32 %v52, 1e-12
    %v90 = vmax.f32 %v64, 1e-12
    %v91 = vmax.f32 %v76, 1e-12
    %v92 = vmax.f32 %v88, 1e-12
    %v93 = vrcp.pop %v89
    %v94 = vmul.f32 %v89, %v93
    %v95 = vsub.f32 1.0, %v94
    %v96 = vmul.f32 %v93, %v95
    %v97 = vadd.f32 %v93, %v96
    %vm98 = vweird.f32 %v89
    %vm99 = vweird.f32 %v93
    %vm100 = vmor %vm98, %vm99
    %v101 = vsel %vm100, %v93, %v97
    %v102 = vand.u32 2147483647, %v89
    %vm103 = vcmp.eq.f32.partialorder %v102, 8.507059e+37
    %v104 = vand.u32 %v89, 2147483648
    %v105 = vor.u32 1.1754944e-38, %v104
    %v106 = vsel %vm103, %v105, %v101
    %v107 = vmul.f32 %v25, %v106
    %v108 = vrcp.pop %v90
    %v109 = vmul.f32 %v90, %v108
    %v110 = vsub.f32 1.0, %v109
    %v111 = vmul.f32 %v108, %v110
    %v112 = vadd.f32 %v108, %v111
    %vm113 = vweird.f32 %v90
    %vm114 = vweird.f32 %v108
    %vm115 = vmor %vm113, %vm114
    %v116 = vsel %vm115, %v108, %v112
    %v117 = vand.u32 2147483647, %v90
    %vm118 = vcmp.eq.f32.partialorder %v117, 8.507059e+37
    %v119 = vand.u32 %v90, 2147483648
    %v120 = vor.u32 1.1754944e-38, %v119
    %v121 = vsel %vm118, %v120, %v116
    %v122 = vmul.f32 %v26, %v121
    %v123 = vrcp.pop %v91
    %v124 = vmul.f32 %v91, %v123
    %v125 = vsub.f32 1.0, %v124
    %v126 = vmul.f32 %v123, %v125
    %v127 = vadd.f32 %v123, %v126
    %vm128 = vweird.f32 %v91
    %vm129 = vweird.f32 %v123
    %vm130 = vmor %vm128, %vm129
    %v131 = vsel %vm130, %v123, %v127
    %v132 = vand.u32 2147483647, %v91
    %vm133 = vcmp.eq.f32.partialorder %v132, 8.507059e+37
    %v134 = vand.u32 %v91, 2147483648
    %v135 = vor.u32 1.1754944e-38, %v134
    %v136 = vsel %vm133, %v135, %v131
    %v137 = vmul.f32 %v27, %v136
    %v138 = vrcp.pop %v92
    %v139 = vmul.f32 %v92, %v138
    %v140 = vsub.f32 1.0, %v139
    %v141 = vmul.f32 %v138, %v140
    %v142 = vadd.f32 %v138, %v141
    %vm143 = vweird.f32 %v92
    %vm144 = vweird.f32 %v138
    %vm145 = vmor %vm143, %vm144
    %v146 = vsel %vm145, %v138, %v142
    %v147 = vand.u32 2147483647, %v92
    %vm148 = vcmp.eq.f32.partialorder %v147, 8.507059e+37
    %v149 = vand.u32 %v92, 2147483648
    %v150 = vor.u32 1.1754944e-38, %v149
    %v151 = vsel %vm148, %v150, %v146
    %v152 = vmul.f32 %v28, %v151
    %153 = vst [vmem:[#allocation5] sm:$0xff] %v107
    %154 = vst [vmem:[#allocation5 + $0x8] sm:$0xff] %v122
    %155 = vst [vmem:[#allocation5 + $0x10] sm:$0xff] %v137
    %156 = vst [vmem:[#allocation5 + $0x18] sm:$0xff] %v152
    // Predicated region
    $region10: #{tpu_custom_call.1} parent=1 // pred_check
      _
    $region11: #{tpu_custom_call.1} parent=1 // pred_check_branch
      %158 = sbr.rel (0) target = $region13
    $region12: #{tpu_custom_call.1} parent=1 // pred_region
      %160 = vsyncadd [#allocation4], 0
      %s161 = sshll.u32 [#allocation5], 4
      %s162 = int_to_ptr.vmem [resolvable:$true] %s161
      %s163 = sshll.u32 %s1, 4
      %s164 = int_to_ptr.hbm [resolvable:$true] %s163
      %169 = dma.vmem_to_hbm [thread:$0]  %s162, 512, %s164, [#allocation4], 128, 128, 8
    $region13: #{tpu_custom_call.1} parent=1 // pred_fallthru
      _
    // Predicated region
    $region14: #{tpu_custom_call.1} parent=1 // pred_check
      _
    $region15: #{tpu_custom_call.1} parent=1 // pred_check_branch
      %171 = sbr.rel (0) target = $region17
    $region16: #{tpu_custom_call.1} parent=1 // pred_region
      %173 = dma.done [#allocation4], 512
    $region17: #{tpu_custom_call.1} parent=1 // pred_fallthru
      _
    %174 = vsyncpa [#allocation3], 1
    %175 = vsyncpa [#allocation4], 1

</llo_original>
